<compile_context>
chip_gen: v7x
topology: tpu7x:2x2x1
jax: 0.10.0
libtpu: 0.0.40
codegen_flags: <defaults>
</compile_context>

<pallas_src>
import functools

import jax
import jax.numpy as jnp
from jax.experimental import pallas as pl
from jax.experimental.pallas import tpu as pltpu


def _triplet_hamming_kernel(a_ref, p_ref, n_ref, loss_ref, *, alpha, beta, margin):
    # Load one (block_b, D) tile of each input and compute per-row losses.
    a = a_ref[...].astype(jnp.float32)
    p = p_ref[...].astype(jnp.float32)
    n = n_ref[...].astype(jnp.float32)

    # Row-wise dot products, kept 2-D: (block_b, 1).
    dp = jnp.sum(a * p, axis=1, keepdims=True)   # calc_hamming_dist(a, p)
    dn = jnp.sum(a * n, axis=1, keepdims=True)   # calc_hamming_dist(a, n)

    # relu(alpha * (-dp) + dn + beta * dn^2 + margin)
    losses = jnp.maximum(alpha * (-dp) + dn + beta * (dn * dn) + margin, 0.0)
    loss_ref[...] = losses


def _pick_block_b(B, D, itemsize, vmem_budget_bytes, target=1024):
    """Largest row tile that (a) respects sublane tiling and (b) fits VMEM."""
    # Sublane multiple: f32 -> 8, bf16 -> 16, int8 -> 32.
    sub = max(8, 32 // itemsize)
    # 3 inputs x 2 pipeline buffers x block_b x D x itemsize must fit budget.
    cap = max(sub, vmem_budget_bytes // (3 * 2 * D * itemsize))
    blk = min(target, cap, max(B, sub))
    blk = max(sub, (blk // sub) * sub)
    return blk


def triplet_loss_hamming_v2(anchor, positive, negative,
                            alpha=1.0, beta=0.1, margin=2.0,
                            block_b=None):
    """Pallas implementation of TripletLossHamming_Criteria_V2.forward."""
    assert anchor.shape == positive.shape == negative.shape
    assert anchor.ndim == 2, "expected (B, D) inputs (reduction over dim 1)"
    B, D = anchor.shape
    itemsize = jnp.dtype(anchor.dtype).itemsize

    # Conservative pipelined-input budget; scoped VMEM limit set explicitly so
    # the same choice works on v5e (16 MiB default) / v6e / v7x (32 MiB).
    vmem_limit_bytes = 32 * 1024 * 1024
    input_budget_bytes = 16 * 1024 * 1024

    if block_b is None:
        block_b = _pick_block_b(B, D, itemsize, input_budget_bytes)
    sub = max(8, 32 // itemsize)
    assert block_b % sub == 0, (
        f"block_b={block_b} must be a multiple of the sublane tile ({sub})")

    # Pad B up to a multiple of block_b (padded rows are sliced off before the
    # final mean, so they never affect the result).
    num_blocks = pl.cdiv(B, block_b)
    B_pad = num_blocks * block_b
    if B_pad != B:
        pad = ((0, B_pad - B), (0, 0))
        anchor = jnp.pad(anchor, pad)
        positive = jnp.pad(positive, pad)
        negative = jnp.pad(negative, pad)

    kernel = functools.partial(
        _triplet_hamming_kernel,
        alpha=float(alpha), beta=float(beta), margin=float(margin))

    in_spec = pl.BlockSpec((block_b, D), lambda i: (i, 0))
    per_row = pl.pallas_call(
        kernel,
        out_shape=jax.ShapeDtypeStruct((B_pad, 1), jnp.float32),
        grid=(num_blocks,),
        in_specs=[in_spec, in_spec, in_spec],
        out_specs=pl.BlockSpec((block_b, 1), lambda i: (i, 0)),
        compiler_params=pltpu.CompilerParams(
            dimension_semantics=("parallel",),   # independent per-row blocks
            vmem_limit_bytes=vmem_limit_bytes),
    )(anchor, positive, negative)

    # Final tiny reduction (mean over the real B rows) in plain JAX.
    return jnp.mean(per_row[:B, 0])


def _reference(anchor, positive, negative, alpha=1.0, beta=0.1, margin=2.0):
    a = anchor.astype(jnp.float32)
    p = positive.astype(jnp.float32)
    n = negative.astype(jnp.float32)
    dp = jnp.sum(a * p, axis=1)
    dn = jnp.sum(a * n, axis=1)
    losses = jax.nn.relu(alpha * (-dp) + dn + beta * jnp.square(dn) + margin)
    return jnp.mean(losses)


if __name__ == "__main__":
    key = jax.random.PRNGKey(0)
    k1, k2, k3 = jax.random.split(key, 3)

    B, D = 8, 32  # small synthetic shapes: batch=8, hash/feature dim=32
    anchor = jax.random.normal(k1, (B, D), dtype=jnp.float32)
    positive = jax.random.normal(k2, (B, D), dtype=jnp.float32)
    negative = jax.random.normal(k3, (B, D), dtype=jnp.float32)

    out = triplet_loss_hamming_v2(anchor, positive, negative,
                                  alpha=1.0, beta=0.1, margin=2.0)
    out = jax.block_until_ready(out)

    ref = _reference(anchor, positive, negative)
    assert jnp.allclose(out, ref, atol=1e-5, rtol=1e-5), (out, ref)

    # Also exercise the tiled/padded path with a larger, non-multiple batch.
    B2, D2 = 300, 64
    a2 = jax.random.normal(k1, (B2, D2), dtype=jnp.float32)
    p2 = jax.random.normal(k2, (B2, D2), dtype=jnp.float32)
    n2 = jax.random.normal(k3, (B2, D2), dtype=jnp.float32)
    out2 = jax.block_until_ready(
        triplet_loss_hamming_v2(a2, p2, n2, block_b=64))
    ref2 = _reference(a2, p2, n2)
    assert jnp.allclose(out2, ref2, atol=1e-5, rtol=1e-5), (out2, ref2)

    print("KERNEL_OK")
</pallas_src>

<mosaic_0001>
module attributes {stable_mosaic.version = 11 : i64} {
  func.func @_triplet_hamming_kernel(%arg0: i32, %arg1: memref<8x32xf32, #tpu.memory_space<vmem>>, %arg2: memref<8x32xf32, #tpu.memory_space<vmem>>, %arg3: memref<8x32xf32, #tpu.memory_space<vmem>>, %arg4: memref<8x1xf32, #tpu.memory_space<vmem>>) attributes {dimension_semantics = [#tpu.dimension_semantics<parallel>], iteration_bounds = array<i64: 1>, scalar_prefetch = 0 : i64, scratch_operands = 0 : i64, tpu.core_type = #tpu.core_type<tc>, window_params = [{transform_indices = @transform_0, window_bounds = array<i64: 8, 32>}, {transform_indices = @transform_1, window_bounds = array<i64: 8, 32>}, {transform_indices = @transform_2, window_bounds = array<i64: 8, 32>}, {transform_indices = @transform_3, window_bounds = array<i64: 8, 1>}]} {
    %c0 = arith.constant 0 : index
    %c0_0 = arith.constant 0 : index
    %0 = vector.load %arg1[%c0, %c0_0] : memref<8x32xf32, #tpu.memory_space<vmem>>, vector<8x32xf32>
    %c0_1 = arith.constant 0 : index
    %c0_2 = arith.constant 0 : index
    %1 = vector.load %arg2[%c0_1, %c0_2] : memref<8x32xf32, #tpu.memory_space<vmem>>, vector<8x32xf32>
    %c0_3 = arith.constant 0 : index
    %c0_4 = arith.constant 0 : index
    %2 = vector.load %arg3[%c0_3, %c0_4] : memref<8x32xf32, #tpu.memory_space<vmem>>, vector<8x32xf32>
    %3 = arith.mulf %0, %1 : vector<8x32xf32>
    %cst = arith.constant dense<0.000000e+00> : vector<8xf32>
    %4 = vector.multi_reduction <add>, %3, %cst [1] : vector<8x32xf32> to vector<8xf32>
    %5 = vector.shape_cast %4 : vector<8xf32> to vector<8x1xf32>
    %6 = arith.mulf %0, %2 : vector<8x32xf32>
    %cst_5 = arith.constant dense<0.000000e+00> : vector<8xf32>
    %7 = vector.multi_reduction <add>, %6, %cst_5 [1] : vector<8x32xf32> to vector<8xf32>
    %8 = vector.shape_cast %7 : vector<8xf32> to vector<8x1xf32>
    %cst_6 = arith.constant 0.000000e+00 : f32
    %9 = vector.broadcast %cst_6 : f32 to vector<8x1xf32>
    %10 = arith.subf %9, %5 : vector<8x1xf32>
    %cst_7 = arith.constant 1.000000e+00 : f32
    %11 = vector.broadcast %cst_7 : f32 to vector<8x1xf32>
    %12 = arith.mulf %11, %10 : vector<8x1xf32>
    %13 = arith.addf %12, %8 : vector<8x1xf32>
    %14 = arith.mulf %8, %8 : vector<8x1xf32>
    %cst_8 = arith.constant 1.000000e-01 : f32
    %15 = vector.broadcast %cst_8 : f32 to vector<8x1xf32>
    %16 = arith.mulf %15, %14 : vector<8x1xf32>
    %17 = arith.addf %13, %16 : vector<8x1xf32>
    %cst_9 = arith.constant 2.000000e+00 : f32
    %18 = vector.broadcast %cst_9 : f32 to vector<8x1xf32>
    %19 = arith.addf %17, %18 : vector<8x1xf32>
    %cst_10 = arith.constant 0.000000e+00 : f32
    %20 = vector.broadcast %cst_10 : f32 to vector<8x1xf32>
    %21 = arith.maximumf %19, %20 : vector<8x1xf32>
    %c0_11 = arith.constant 0 : index
    %c0_12 = arith.constant 0 : index
    %22 = vector.load %arg4[%c0_11, %c0_12] : memref<8x1xf32, #tpu.memory_space<vmem>>, vector<8x1xf32>
    tpu.vector_store %arg4[%c0_11, %c0_12], %21 {strides = array<i32>} : memref<8x1xf32, #tpu.memory_space<vmem>>, vector<8x1xf32>,
    return
  }
  func.func @transform_0(%arg0: i32) -> (i32, i32) {
    %c0_i32 = arith.constant 0 : i32
    %c0_i32_0 = arith.constant 0 : i32
    return %arg0, %c0_i32 : i32, i32
  }
  func.func @transform_1(%arg0: i32) -> (i32, i32) {
    %c0_i32 = arith.constant 0 : i32
    %c0_i32_0 = arith.constant 0 : i32
    return %arg0, %c0_i32 : i32, i32
  }
  func.func @transform_2(%arg0: i32) -> (i32, i32) {
    %c0_i32 = arith.constant 0 : i32
    %c0_i32_0 = arith.constant 0 : i32
    return %arg0, %c0_i32 : i32, i32
  }
  func.func @transform_3(%arg0: i32) -> (i32, i32) {
    %c0_i32 = arith.constant 0 : i32
    %c0_i32_0 = arith.constant 0 : i32
    return %arg0, %c0_i32 : i32, i32
  }
}

</mosaic_0001>

<llo_original>
// kernel: tpu_custom_call.1
$region0: #{tpu_custom_call.1}
  #allocation0 [shape = 'u32[]', space=smem, size = 0x4, offset = 0x4, fixed_abs, tag = 'smem constant byte address 0x4 - core index']
  #allocation1 [shape = 'u32[144,128]{1,0:T(1,128)}', space=vmem, size = 0x12000, scoped, tag = 'internal scratch']
  %s0 = inlined_call_operand.hbm [shape: f32[8,32], index: 0, kind: input, shape index: {}]
  %s1 = inlined_call_operand.hbm [shape: f32[8,32], index: 1, kind: input, shape index: {}]
  %s2 = inlined_call_operand.hbm [shape: f32[8,32], index: 2, kind: input, shape index: {}]
  %s3 = inlined_call_operand.vmem [shape: f32[8,1], index: 3, kind: output, shape index: {}]
  %s4 = sld [smem:[#allocation0]]
  $region34: #{tpu_custom_call.1} parent=0
    _
  %s6 = ssub.s32 1, %s4
  %s7 = scalar_select 0, %s6, %s4
  $region1: #{tpu_custom_call.1} parent=0
    #allocation2 [shape = 'u8[4096]{0}', space=vmem, size = 0x1000, scoped, tag = 'input window, operand 0, single buffered']
    #allocation3 [shape = 's32[1]{0}', space=sflag, size = 0x4, scoped, tag = 'scoped memory for tpu_custom_call.1']
    #allocation4 [shape = 'u8[4096]{0}', space=vmem, size = 0x1000, scoped, tag = 'input window, operand 1, single buffered']
    #allocation5 [shape = 's32[1]{0}', space=sflag, size = 0x4, scoped, tag = 'scoped memory for tpu_custom_call.1']
    #allocation6 [shape = 'u8[4096]{0}', space=vmem, size = 0x1000, scoped, tag = 'input window, operand 2, single buffered']
    %8 = vsyncpa [#allocation3], 0
    %9 = vsyncpa [#allocation5], 0
    // Predicated region
    $region2: #{tpu_custom_call.1} parent=1 // pred_check
      _
    $region3: #{tpu_custom_call.1} parent=1 // pred_check_branch
      %11 = sbr.rel (0) target = $region5
    $region4: #{tpu_custom_call.1} parent=1 // pred_region
      %s13 = ssub.s32 128, 128
      %14 = vsyncadd [#allocation3], %s13
      %s16 = sshll.u32 [#allocation2], 4
      %s17 = int_to_ptr.vmem [resolvable:$true] %s16
      %19 = dma.hbm_to_vmem [thread:$0]  %s0, 128, %s17, [#allocation3]
    $region5: #{tpu_custom_call.1} parent=1 // pred_fallthru
      _
    // Predicated region
    $region6: #{tpu_custom_call.1} parent=1 // pred_check
      _
    $region7: #{tpu_custom_call.1} parent=1 // pred_check_branch
      %21 = sbr.rel (0) target = $region9
    $region8: #{tpu_custom_call.1} parent=1 // pred_region
      %s23 = ssub.s32 128, 128
      %24 = vsyncadd [#allocation5], %s23
      %s26 = sshll.u32 [#allocation4], 4
      %s27 = int_to_ptr.vmem [resolvable:$true] %s26
      %29 = dma.hbm_to_vmem [thread:$0]  %s1, 128, %s27, [#allocation5]
    $region9: #{tpu_custom_call.1} parent=1 // pred_fallthru
      _
    // Predicated region
    $region10: #{tpu_custom_call.1} parent=1 // pred_check
      _
    $region11: #{tpu_custom_call.1} parent=1 // pred_check_branch
      %31 = sbr.rel (0) target = $region13
    $region12: #{tpu_custom_call.1} parent=1 // pred_region
      %s33 = ssub.s32 128, 128
      %34 = vsyncadd [#allocation5], %s33
      %s36 = sshll.u32 [#allocation6], 4
      %s37 = int_to_ptr.vmem [resolvable:$true] %s36
      %39 = dma.hbm_to_vmem [thread:$0]  %s2, 128, %s37, [#allocation5]
    $region13: #{tpu_custom_call.1} parent=1 // pred_fallthru
      _
    // Predicated region
    $region14: #{tpu_custom_call.1} parent=1 // pred_check
      _
    $region15: #{tpu_custom_call.1} parent=1 // pred_check_branch
      %41 = sbr.rel (0) target = $region17
    $region16: #{tpu_custom_call.1} parent=1 // pred_region
      %42 = dma.done [#allocation3], 128
    $region17: #{tpu_custom_call.1} parent=1 // pred_fallthru
      _
    // Predicated region
    $region18: #{tpu_custom_call.1} parent=1 // pred_check
      _
    $region19: #{tpu_custom_call.1} parent=1 // pred_check_branch
      %44 = sbr.rel (0) target = $region21
    $region20: #{tpu_custom_call.1} parent=1 // pred_region
      %45 = dma.done [#allocation5], 128
    $region21: #{tpu_custom_call.1} parent=1 // pred_fallthru
      _
    // Predicated region
    $region22: #{tpu_custom_call.1} parent=1 // pred_check
      _
    $region23: #{tpu_custom_call.1} parent=1 // pred_check_branch
      %47 = sbr.rel (0) target = $region25
    $region24: #{tpu_custom_call.1} parent=1 // pred_region
      %48 = dma.done [#allocation5], 128
    $region25: #{tpu_custom_call.1} parent=1 // pred_fallthru
      _
    %v49 = vld [vmem:[#allocation2] sm:$0xff]
    %v50 = vld [vmem:[#allocation4] sm:$0xff]
    %v51 = vld [vmem:[#allocation6] sm:$0xff]
    %v52 = vmul.f32 %v49, %v50
    %vm53 = vcmask 261120
    %v54 = vsel %vm53, %v52, 0.0
    %55 = vadd.xlane.f32.xlu0 %v54
    %v56 = vpop.xlane.xlu0 %55
    %v57 = vmul.f32 %v49, %v51
    %v58 = vsel %vm53, %v57, 0.0
    %59 = vadd.xlane.f32.xlu0 %v58
    %v60 = vpop.xlane.xlu0 %59
    %v61 = vsub.f32 0.0, %v56
    %v62 = vadd.f32 %v61, %v60
    %v63 = vmul.f32 %v60, %v60
    %v64 = vmul.f32 %v63, 0.1
    %v65 = vadd.f32 %v62, %v64
    %v66 = vadd.f32 %v65, 2.0
    %v67 = vmax.f32 %v66, 0.0
    %vm68 = vcmask 7168
    %69 = vst.msk [vmem:[%s3] sm:$0xff] %vm68, %v67
    // Predicated region
    $region26: #{tpu_custom_call.1} parent=1 // pred_check
      _
    $region27: #{tpu_custom_call.1} parent=1 // pred_check_branch
      %71 = sbr.rel (0) target = $region29
    $region28: #{tpu_custom_call.1} parent=1 // pred_region
      _
    $region29: #{tpu_custom_call.1} parent=1 // pred_fallthru
      _
    // Predicated region
    $region30: #{tpu_custom_call.1} parent=1 // pred_check
      _
    $region31: #{tpu_custom_call.1} parent=1 // pred_check_branch
      %73 = sbr.rel (0) target = $region33
    $region32: #{tpu_custom_call.1} parent=1 // pred_region
      _
    $region33: #{tpu_custom_call.1} parent=1 // pred_fallthru
      _
    %74 = vsyncpa [#allocation3], 1
    %75 = vsyncpa [#allocation5], 1

</llo_original>
